<compile_context>
chip_gen: v7x
topology: tpu7x:2x2x1
jax: 0.10.0
libtpu: 0.0.40
codegen_flags: <defaults>
</compile_context>

<pallas_src>
import math

import jax
import jax.numpy as jnp
from jax.experimental import pallas as pl
from jax.experimental.pallas import tpu as pltpu


def _linreg_kernel(x_ref, w_ref, b_ref, o_ref, acc_ref):
    # x_ref: (TM, TK) VMEM   w_ref: (1, TK) VMEM   b_ref: (1, 1) SMEM
    # o_ref: (TM, 1) VMEM    acc_ref: (TM, 1) f32 VMEM scratch
    k = pl.program_id(1)

    @pl.when(k == 0)
    def _():
        acc_ref[...] = jnp.zeros_like(acc_ref)

    x = x_ref[...].astype(jnp.float32)
    w = w_ref[...].astype(jnp.float32)            # (1, TK) broadcasts over rows
    acc_ref[...] += jnp.sum(x * w, axis=-1, keepdims=True)

    @pl.when(k == pl.num_programs(1) - 1)
    def _():
        o_ref[...] = (acc_ref[...] + b_ref[0, 0]).astype(o_ref.dtype)


def _choose_tiles(B, D, itemsize):
    """Pick (TM, TK) so a single x tile stays ~<=4 MiB (double-buffers fit all gens)."""
    target_tile_bytes = 4 << 20
    tk = D
    # Split D only when even 8 rows of the full feature dim would blow the budget;
    # require exact division so no padded garbage enters the reduction.
    if D * itemsize * 8 > target_tile_bytes:
        for cand in (16384, 8192, 4096, 2048, 1024, 512, 256, 128):
            if D % cand == 0:
                tk = cand
                break
    tm = max(8, min(2048, target_tile_bytes // (tk * itemsize)))
    tm = (tm // 8) * 8                            # sublane alignment
    if B <= tm:
        tm = B                                    # single block: full-extent exemption
    return tm, tk


def linear_regression_forward(x, weight, bias, *, compute_dtype=None):
    """x: (B, C, H, W); weight: (1, D); bias: (1,) -> out: (B, 1)."""
    B = x.shape[0]
    D = math.prod(x.shape[1:])
    out_dtype = x.dtype

    x2d = x.reshape(B, D)                         # nn.Flatten()
    w_row = weight.reshape(1, D)                  # lane-dense weight layout
    b_sc = bias.reshape(1, 1)

    if compute_dtype is not None:                 # optional bf16 streaming, f32 accum
        x2d = x2d.astype(compute_dtype)
        w_row = w_row.astype(compute_dtype)

    itemsize = jnp.dtype(x2d.dtype).itemsize
    tm, tk = _choose_tiles(B, D, itemsize)
    grid = (pl.cdiv(B, tm), pl.cdiv(D, tk))

    cost = pl.CostEstimate(
        flops=2 * B * D,
        transcendentals=0,
        bytes_accessed=itemsize * (B * D + D) + 4 * (B + 1),
    )

    out = pl.pallas_call(
        _linreg_kernel,
        out_shape=jax.ShapeDtypeStruct((B, 1), out_dtype),
        grid=grid,
        in_specs=[
            pl.BlockSpec((tm, tk), lambda i, k: (i, k)),        # x tile (streamed)
            pl.BlockSpec((1, tk), lambda i, k: (0, k)),         # weight slice (resident)
            pl.BlockSpec(memory_space=pltpu.MemorySpace.SMEM),  # bias scalar
        ],
        out_specs=pl.BlockSpec((tm, 1), lambda i, k: (i, 0)),
        scratch_shapes=[pltpu.VMEM((tm, 1), jnp.float32)],
        compiler_params=pltpu.CompilerParams(
            dimension_semantics=("parallel", "arbitrary"),
        ),
        cost_estimate=cost,
    )(x2d, w_row, b_sc)
    return out


if __name__ == "__main__":
    key = jax.random.PRNGKey(0)
    kx, kw, kb = jax.random.split(key, 3)

    # Small shapes consistent with the module: batch=2, channels=4, spatial=16x16.
    B, C, H, W = 2, 4, 16, 16
    D = C * H * W

    x = jax.random.normal(kx, (B, C, H, W), dtype=jnp.float32)
    # Deterministic parameter init (LazyLinear(1) -> weight (1, D), bias (1,)).
    weight = jax.random.normal(kw, (1, D), dtype=jnp.float32) * 0.01
    bias = jax.random.normal(kb, (1,), dtype=jnp.float32) * 0.01

    y = linear_regression_forward(x, weight, bias)
    y = jax.block_until_ready(y)

    # Reference check in plain JAX.
    y_ref = x.reshape(B, D) @ weight.T + bias
    assert y.shape == (B, 1)
    assert jnp.allclose(y, y_ref, atol=1e-5, rtol=1e-5)

    print("KERNEL_OK")
</pallas_src>

<mosaic_0001>
module attributes {stable_mosaic.version = 11 : i64} {
  func.func @_linreg_kernel(%arg0: i32, %arg1: i32, %arg2: memref<2x1024xf32, #tpu.memory_space<vmem>>, %arg3: memref<1x1024xf32, #tpu.memory_space<vmem>>, %arg4: memref<1x1xf32, #tpu.memory_space<smem>>, %arg5: memref<2x1xf32, #tpu.memory_space<vmem>>, %arg6: memref<2x1xf32, #tpu.memory_space<vmem>>) attributes {dimension_semantics = [#tpu.dimension_semantics<parallel>, #tpu.dimension_semantics<arbitrary>], iteration_bounds = array<i64: 1, 1>, scalar_prefetch = 0 : i64, scratch_operands = 1 : i64, tpu.core_type = #tpu.core_type<tc>, window_params = [{transform_indices = @transform_0, window_bounds = array<i64: 2, 1024>}, {transform_indices = @transform_1, window_bounds = array<i64: 1, 1024>}, {transform_indices = @transform_2, window_bounds = array<i64: 1, 1>}, {transform_indices = @transform_3, window_bounds = array<i64: 2, 1>}]} {
    %c0_i32 = arith.constant 0 : i32
    %0 = arith.cmpi eq, %arg1, %c0_i32 : i32
    %1 = arith.extui %0 : i1 to i32
    %c0_i32_0 = arith.constant 0 : i32
    %2 = arith.cmpi ne, %1, %c0_i32_0 : i32
    scf.if %2 {
      %cst_10 = arith.constant 0.000000e+00 : f32
      %15 = vector.broadcast %cst_10 : f32 to vector<2x1xf32>
      %c0_11 = arith.constant 0 : index
      %c0_12 = arith.constant 0 : index
      %16 = vector.load %arg6[%c0_11, %c0_12] : memref<2x1xf32, #tpu.memory_space<vmem>>, vector<2x1xf32>
      tpu.vector_store %arg6[%c0_11, %c0_12], %15 {strides = array<i32>} : memref<2x1xf32, #tpu.memory_space<vmem>>, vector<2x1xf32>,
    } else {
    }
    %c0 = arith.constant 0 : index
    %c0_1 = arith.constant 0 : index
    %3 = vector.load %arg2[%c0, %c0_1] : memref<2x1024xf32, #tpu.memory_space<vmem>>, vector<2x1024xf32>
    %c0_2 = arith.constant 0 : index
    %c0_3 = arith.constant 0 : index
    %4 = vector.load %arg3[%c0_2, %c0_3] : memref<1x1024xf32, #tpu.memory_space<vmem>>, vector<1x1024xf32>
    %c0_4 = arith.constant 0 : index
    %c0_5 = arith.constant 0 : index
    %5 = vector.load %arg6[%c0_4, %c0_5] : memref<2x1xf32, #tpu.memory_space<vmem>>, vector<2x1xf32>
    %6 = vector.broadcast %4 : vector<1x1024xf32> to vector<2x1024xf32>
    %7 = arith.mulf %3, %6 : vector<2x1024xf32>
    %cst = arith.constant dense<0.000000e+00> : vector<2xf32>
    %8 = vector.multi_reduction <add>, %7, %cst [1] : vector<2x1024xf32> to vector<2xf32>
    %9 = vector.shape_cast %8 : vector<2xf32> to vector<2x1xf32>
    %10 = arith.addf %5, %9 : vector<2x1xf32>
    %c0_6 = arith.constant 0 : index
    %c0_7 = arith.constant 0 : index
    %11 = vector.load %arg6[%c0_6, %c0_7] : memref<2x1xf32, #tpu.memory_space<vmem>>, vector<2x1xf32>
    tpu.vector_store %arg6[%c0_6, %c0_7], %10 {strides = array<i32>} : memref<2x1xf32, #tpu.memory_space<vmem>>, vector<2x1xf32>,
    %c0_i32_8 = arith.constant 0 : i32
    %12 = arith.cmpi eq, %arg1, %c0_i32_8 : i32
    %13 = arith.extui %12 : i1 to i32
    %c0_i32_9 = arith.constant 0 : i32
    %14 = arith.cmpi ne, %13, %c0_i32_9 : i32
    scf.if %14 {
      %c0_10 = arith.constant 0 : index
      %c0_11 = arith.constant 0 : index
      %15 = vector.load %arg6[%c0_10, %c0_11] : memref<2x1xf32, #tpu.memory_space<vmem>>, vector<2x1xf32>
      %c0_12 = arith.constant 0 : index
      %c0_13 = arith.constant 0 : index
      %16 = memref.load %arg4[%c0_12, %c0_13] : memref<1x1xf32, #tpu.memory_space<smem>>
      %17 = vector.broadcast %16 : f32 to vector<2x1xf32>
      %18 = arith.addf %15, %17 : vector<2x1xf32>
      %c0_14 = arith.constant 0 : index
      %c0_15 = arith.constant 0 : index
      %19 = vector.load %arg5[%c0_14, %c0_15] : memref<2x1xf32, #tpu.memory_space<vmem>>, vector<2x1xf32>
      tpu.vector_store %arg5[%c0_14, %c0_15], %18 {strides = array<i32>} : memref<2x1xf32, #tpu.memory_space<vmem>>, vector<2x1xf32>,
    } else {
    }
    return
  }
  func.func @transform_0(%arg0: i32, %arg1: i32) -> (i32, i32) {
    %c0_i32 = arith.constant 0 : i32
    return %arg0, %arg1 : i32, i32
  }
  func.func @transform_1(%arg0: i32, %arg1: i32) -> (i32, i32) {
    %c0_i32 = arith.constant 0 : i32
    %c0_i32_0 = arith.constant 0 : i32
    return %c0_i32, %arg1 : i32, i32
  }
  func.func @transform_2(%arg0: i32, %arg1: i32) -> (i32, i32) {
    %c0_i32 = arith.constant 0 : i32
    %c0_i32_0 = arith.constant 0 : i32
    %c0_i32_1 = arith.constant 0 : i32
    return %c0_i32, %c0_i32_0 : i32, i32
  }
  func.func @transform_3(%arg0: i32, %arg1: i32) -> (i32, i32) {
    %c0_i32 = arith.constant 0 : i32
    %c0_i32_0 = arith.constant 0 : i32
    return %arg0, %c0_i32 : i32, i32
  }
}

</mosaic_0001>

<llo_original>
// kernel: tpu_custom_call.1
$region0: #{tpu_custom_call.1}
  #allocation0 [shape = 'u32[]', space=smem, size = 0x4, offset = 0x4, fixed_abs, tag = 'smem constant byte address 0x4 - core index']
  #allocation1 [shape = 'u32[144,128]{1,0:T(1,128)}', space=vmem, size = 0x12000, scoped, tag = 'internal scratch']
  #allocation2 [shape = 'f32[2,1]{1,0:T(2,128)}', space=vmem, size = 0x400, scoped, tag = 'scratch operand']
  #allocation3 [shape = 'f32[1,1]{1,0:T(1,128)S(6)}', space=smem, size = 0x200, scoped, tag = 'scoped memory for tpu_custom_call.1']
  %s0 = inlined_call_operand.hbm [shape: f32[2,1024], index: 0, kind: input, shape index: {}]
  %s1 = inlined_call_operand.hbm [shape: f32[1,1024], index: 1, kind: input, shape index: {}]
  %s2 = inlined_call_operand.<no memory space> [shape: f32[1,1], index: 2, kind: input, shape index: {}]
  %s3 = inlined_call_operand.vmem [shape: f32[2,1], index: 3, kind: output, shape index: {}]
  %s4 = sld [smem:[#allocation0]]
  $region38: #{tpu_custom_call.1} parent=0
    _
  %s6 = ssub.s32 1, %s4
  %s7 = scalar_select 0, %s6, %s4
  %8 = sst [smem:[#allocation3]] %s2
  $region1: #{tpu_custom_call.1} parent=0
    #allocation4 [shape = 'u8[8192]{0}', space=vmem, size = 0x2000, scoped, tag = 'input window, operand 0, single buffered']
    #allocation5 [shape = 's32[1]{0}', space=sflag, size = 0x4, scoped, tag = 'scoped memory for tpu_custom_call.1']
    #allocation6 [shape = 'u8[4096]{0}', space=vmem, size = 0x1000, scoped, tag = 'input window, operand 1, single buffered']
    #allocation7 [shape = 's32[1]{0}', space=sflag, size = 0x4, scoped, tag = 'scoped memory for tpu_custom_call.1']
    %9 = vsyncpa [#allocation5], 0
    %10 = vsyncpa [#allocation7], 0
    // Predicated region
    $region2: #{tpu_custom_call.1} parent=1 // pred_check
      _
    $region3: #{tpu_custom_call.1} parent=1 // pred_check_branch
      %12 = sbr.rel (0) target = $region5
    $region4: #{tpu_custom_call.1} parent=1 // pred_region
      %s14 = ssub.s32 256, 256
      %15 = vsyncadd [#allocation5], %s14
      %s17 = sshll.u32 [#allocation4], 4
      %s18 = int_to_ptr.vmem [resolvable:$true] %s17
      %20 = dma.hbm_to_vmem [thread:$0]  %s0, 256, %s18, [#allocation5]
    $region5: #{tpu_custom_call.1} parent=1 // pred_fallthru
      _
    // Predicated region
    $region6: #{tpu_custom_call.1} parent=1 // pred_check
      _
    $region7: #{tpu_custom_call.1} parent=1 // pred_check_branch
      %22 = sbr.rel (0) target = $region9
    $region8: #{tpu_custom_call.1} parent=1 // pred_region
      %s24 = ssub.s32 128, 128
      %25 = vsyncadd [#allocation7], %s24
      %s27 = sshll.u32 [#allocation6], 4
      %s28 = int_to_ptr.vmem [resolvable:$true] %s27
      %30 = dma.hbm_to_vmem [thread:$0]  %s1, 128, %s28, [#allocation7]
    $region9: #{tpu_custom_call.1} parent=1 // pred_fallthru
      _
    // Predicated region
    $region10: #{tpu_custom_call.1} parent=1 // pred_check
      _
    $region11: #{tpu_custom_call.1} parent=1 // pred_check_branch
      %32 = sbr.rel (0) target = $region13
    $region12: #{tpu_custom_call.1} parent=1 // pred_region
      _
    $region13: #{tpu_custom_call.1} parent=1 // pred_fallthru
      _
    // Predicated region
    $region14: #{tpu_custom_call.1} parent=1 // pred_check
      _
    $region15: #{tpu_custom_call.1} parent=1 // pred_check_branch
      %34 = sbr.rel (0) target = $region17
    $region16: #{tpu_custom_call.1} parent=1 // pred_region
      %35 = dma.done [#allocation5], 256
    $region17: #{tpu_custom_call.1} parent=1 // pred_fallthru
      _
    // Predicated region
    $region18: #{tpu_custom_call.1} parent=1 // pred_check
      _
    $region19: #{tpu_custom_call.1} parent=1 // pred_check_branch
      %37 = sbr.rel (0) target = $region21
    $region20: #{tpu_custom_call.1} parent=1 // pred_region
      %38 = dma.done [#allocation7], 128
    $region21: #{tpu_custom_call.1} parent=1 // pred_fallthru
      _
    %p39 = scmp.eq.s32.totalorder 0, 0
    // Predicated region
    $region22: #{tpu_custom_call.1} parent=1 // pred_check
      %p40 = pneg %p39
    $region23: #{tpu_custom_call.1} parent=1 // pred_check_branch
      %42 = sbr.rel (%p40) target = $region25
    $region24: #{tpu_custom_call.1} parent=1 // pred_region
      %vm43 = vcmask 1024
      %44 = vst.msk [vmem:[#allocation2] sm:$0x3] %vm43, 0.0
    $region25: #{tpu_custom_call.1} parent=1 // pred_fallthru
      _
    %v45 = vld [vmem:[#allocation4] sm:$0xff]
    %v46 = vld [vmem:[#allocation4 + $0x8] sm:$0xff]
    %v47 = vld [vmem:[#allocation6] sm:$0xff]
    %v48 = vld [vmem:[#allocation2] sm:$0x3]
    %v50 = vlaneseq
    %v51 = vshrl.u32 %v50, 7
    %v52 = vsub.s32 0, %v51
    %v53 = vrot.slane %v47, %v52
    %v54 = vlaneseq
    %v55 = vshrl.u32 %v54, 7
    %v56 = vsub.s32 1, %v55
    %v57 = vrot.slane %v47, %v56
    %v58 = vlaneseq
    %v59 = vshrl.u32 %v58, 7
    %v60 = vsub.s32 2, %v59
    %v61 = vrot.slane %v47, %v60
    %v62 = vlaneseq
    %v63 = vshrl.u32 %v62, 7
    %v64 = vsub.s32 3, %v63
    %v65 = vrot.slane %v47, %v64
    %v66 = vlaneseq
    %v67 = vshrl.u32 %v66, 7
    %v68 = vsub.s32 4, %v67
    %v69 = vrot.slane %v47, %v68
    %v70 = vlaneseq
    %v71 = vshrl.u32 %v70, 7
    %v72 = vsub.s32 5, %v71
    %v73 = vrot.slane %v47, %v72
    %v74 = vlaneseq
    %v75 = vshrl.u32 %v74, 7
    %v76 = vsub.s32 6, %v75
    %v77 = vrot.slane %v47, %v76
    %v78 = vlaneseq
    %v79 = vshrl.u32 %v78, 7
    %v80 = vsub.s32 7, %v79
    %v81 = vrot.slane %v47, %v80
    %v82 = vcombine.low %v53, %v57
    %v83 = vcombine.low %v61, %v65
    %v85 = vunpack.c.l.s4 1983009808
    %v86 = vunpack.c.0.s8 %v85
    %v87 = vlaneseq
    %v88 = vshrl.u32 %v87, 7
    %v89 = vsub.s32 %v86, %v88
    %v90 = vrot.slane %v82, %v89
    %v92 = vunpack.c.l.s4 1983009808
    %v93 = vunpack.c.0.s8 %v92
    %v94 = vlaneseq
    %v95 = vshrl.u32 %v94, 7
    %v96 = vsub.s32 %v93, %v95
    %v97 = vrot.slane %v83, %v96
    %v98 = vcombine.low %v90, %v97
    %v99 = vcombine.low %v69, %v73
    %v100 = vcombine.low %v77, %v81
    %v102 = vunpack.c.l.s4 1983009808
    %v103 = vunpack.c.0.s8 %v102
    %v104 = vlaneseq
    %v105 = vshrl.u32 %v104, 7
    %v106 = vsub.s32 %v103, %v105
    %v107 = vrot.slane %v99, %v106
    %v109 = vunpack.c.l.s4 1983009808
    %v110 = vunpack.c.0.s8 %v109
    %v111 = vlaneseq
    %v112 = vshrl.u32 %v111, 7
    %v113 = vsub.s32 %v110, %v112
    %v114 = vrot.slane %v100, %v113
    %v115 = vcombine.low %v107, %v114
    %v118 = vmul.f32 %v45, %v98
    %v119 = vmul.f32 %v46, %v115
    %v122 = vcombine.high %v118, %v118
    %v124 = vunpack.c.l.s4 1983009808
    %v125 = vunpack.c.0.s8 %v124
    %v126 = vlaneseq
    %v127 = vshrl.u32 %v126, 7
    %v128 = vsub.s32 %v125, %v127
    %v129 = vrot.slane %v118, %v128
    %v131 = vunpack.c.l.s4 1983009808
    %v132 = vunpack.c.0.s8 %v131
    %v133 = vlaneseq
    %v134 = vshrl.u32 %v133, 7
    %v135 = vsub.s32 %v132, %v134
    %v136 = vrot.slane %v122, %v135
    %v137 = vcombine.high %v129, %v129
    %v138 = vcombine.high %v136, %v136
    %v139 = vcombine.high %v119, %v119
    %v141 = vunpack.c.l.s4 1983009808
    %v142 = vunpack.c.0.s8 %v141
    %v143 = vlaneseq
    %v144 = vshrl.u32 %v143, 7
    %v145 = vsub.s32 %v142, %v144
    %v146 = vrot.slane %v119, %v145
    %v148 = vunpack.c.l.s4 1983009808
    %v149 = vunpack.c.0.s8 %v148
    %v150 = vlaneseq
    %v151 = vshrl.u32 %v150, 7
    %v152 = vsub.s32 %v149, %v151
    %v153 = vrot.slane %v139, %v152
    %v154 = vcombine.high %v146, %v146
    %v155 = vcombine.high %v153, %v153
    %vm164 = vcmask 1041408
    %v165 = vsel %vm164, %v129, 0.0
    %v166 = vsel %vm164, %v137, 0.0
    %v167 = vadd.f32 %v165, %v166
    %v168 = vsel %vm164, %v136, 0.0
    %v169 = vadd.f32 %v167, %v168
    %v170 = vsel %vm164, %v138, 0.0
    %v171 = vadd.f32 %v169, %v170
    %v172 = vsel %vm164, %v146, 0.0
    %v173 = vadd.f32 %v171, %v172
    %v174 = vsel %vm164, %v154, 0.0
    %v175 = vadd.f32 %v173, %v174
    %v176 = vsel %vm164, %v153, 0.0
    %v177 = vadd.f32 %v175, %v176
    %v178 = vsel %vm164, %v155, 0.0
    %v179 = vadd.f32 %v177, %v178
    %180 = vadd.xlane.f32.xlu0 %v179
    %v181 = vpop.xlane.xlu0 %180
    %v182 = vadd.f32 %v48, %v181
    %vm183 = vcmask 1024
    %184 = vst.msk [vmem:[#allocation2] sm:$0x3] %vm183, %v182
    // Predicated region
    $region26: #{tpu_custom_call.1} parent=1 // pred_check
      %p185 = pneg %p39
    $region27: #{tpu_custom_call.1} parent=1 // pred_check_branch
      %187 = sbr.rel (%p185) target = $region29
    $region28: #{tpu_custom_call.1} parent=1 // pred_region
      %v188 = vld [vmem:[#allocation2] sm:$0x3]
      %s189 = sld [smem:[#allocation3]]
      %v190 = vstv %s189
      %v191 = vadd.f32 %v188, %v190
      %192 = vst.msk [vmem:[%s3] sm:$0x3] %vm183, %v191
    $region29: #{tpu_custom_call.1} parent=1 // pred_fallthru
      _
    // Predicated region
    $region30: #{tpu_custom_call.1} parent=1 // pred_check
      _
    $region31: #{tpu_custom_call.1} parent=1 // pred_check_branch
      %194 = sbr.rel (0) target = $region33
    $region32: #{tpu_custom_call.1} parent=1 // pred_region
      _
    $region33: #{tpu_custom_call.1} parent=1 // pred_fallthru
      _
    // Predicated region
    $region34: #{tpu_custom_call.1} parent=1 // pred_check
      _
    $region35: #{tpu_custom_call.1} parent=1 // pred_check_branch
      %196 = sbr.rel (0) target = $region37
    $region36: #{tpu_custom_call.1} parent=1 // pred_region
      _
    $region37: #{tpu_custom_call.1} parent=1 // pred_fallthru
      _
    %197 = vsyncpa [#allocation5], 1
    %198 = vsyncpa [#allocation7], 1

</llo_original>
